<compile_context>
chip_gen: v5e
topology: v5e:2x2
jax: 0.10.0
libtpu: 0.0.40
codegen_flags: <defaults>
</compile_context>

<pallas_src>
import functools

import jax
import jax.numpy as jnp
from jax.experimental import pallas as pl
from jax.experimental.pallas import tpu as pltpu


_PARALLEL_1D = pltpu.CompilerParams(dimension_semantics=("parallel",))


def _row_tile(M, max_tile=256):
    """Largest row tile <= max_tile that divides M (keeps every block full)."""
    if M <= max_tile:
        return M
    for t in (256, 128, 64, 32, 16, 8):
        if t <= max_tile and M % t == 0:
            return t
    return M


def _ln(h, g, b, eps):
    """LayerNorm over last dim in f32 (PyTorch semantics)."""
    mean = jnp.mean(h, axis=-1, keepdims=True)
    c = h - mean
    var = jnp.mean(c * c, axis=-1, keepdims=True)
    return c * jax.lax.rsqrt(var + eps) * g + b


# ----------------------------- Pallas kernels -----------------------------


def _linear_kernel(x_ref, w_ref, b_ref, o_ref, *, activation):
    x = x_ref[...].astype(jnp.bfloat16)
    y = jnp.dot(x, w_ref[...], preferred_element_type=jnp.float32) + b_ref[...]
    if activation == "relu":
        y = jnp.maximum(y, 0.0)
    o_ref[...] = y.astype(o_ref.dtype)


def _linear_res_ln_kernel(x_ref, res_ref, w_ref, b_ref, g_ref, bt_ref, o_ref, *, eps):
    """o = LN(res + (x @ w + b))  -- out-proj + residual + LayerNorm fused."""
    x = x_ref[...].astype(jnp.bfloat16)
    y = jnp.dot(x, w_ref[...], preferred_element_type=jnp.float32) + b_ref[...]
    h = y + res_ref[...].astype(jnp.float32)
    o_ref[...] = _ln(h, g_ref[...], bt_ref[...], eps).astype(o_ref.dtype)


def _ffn_res_ln_kernel(x_ref, w1_ref, b1_ref, w2_ref, b2_ref, g_ref, bt_ref,
                       o_ref, *, eps):
    """o = LN(x + (relu(x @ w1 + b1) @ w2 + b2))  -- whole FFN block fused."""
    x = x_ref[...].astype(jnp.float32)
    h = jnp.dot(x.astype(jnp.bfloat16), w1_ref[...],
                preferred_element_type=jnp.float32) + b1_ref[...]
    h = jnp.maximum(h, 0.0)
    y = jnp.dot(h.astype(jnp.bfloat16), w2_ref[...],
                preferred_element_type=jnp.float32) + b2_ref[...]
    z = x + y
    o_ref[...] = _ln(z, g_ref[...], bt_ref[...], eps).astype(o_ref.dtype)


def _linear_ln_kernel(x_ref, w_ref, b_ref, g_ref, bt_ref, o_ref, *, eps):
    """o = LN(x @ w + b)  -- fc + final LayerNorm fused."""
    x = x_ref[...].astype(jnp.bfloat16)
    y = jnp.dot(x, w_ref[...], preferred_element_type=jnp.float32) + b_ref[...]
    o_ref[...] = _ln(y, g_ref[...], bt_ref[...], eps).astype(o_ref.dtype)


def _attention_kernel(qkv_ref, o_ref, *, nhead, emb):
    """Per-batch MHA. qkv_ref block: (1, T, 3E) with q pre-scaled by 1/sqrt(dh).

    Heads are looped (unrolled) inside the kernel; the output is written once
    as a lane-dense (T, E) slab (E >= 128) instead of per-(b, h) dh-wide tiles.
    """
    qkv = qkv_ref[0]                                        # (T, 3E) f32
    dh = emb // nhead
    outs = []
    for h in range(nhead):
        q = qkv[:, h * dh:(h + 1) * dh].astype(jnp.bfloat16)
        k = qkv[:, emb + h * dh: emb + (h + 1) * dh].astype(jnp.bfloat16)
        v = qkv[:, 2 * emb + h * dh: 2 * emb + (h + 1) * dh].astype(jnp.bfloat16)
        # scores: contract dh of q with dh of k (no explicit transpose)
        s = jax.lax.dot_general(q, k, (((1,), (1,)), ((), ())),
                                preferred_element_type=jnp.float32)  # (T, T)
        m = jnp.max(s, axis=-1, keepdims=True)
        p = jnp.exp(s - m)
        p = p * pl.reciprocal(jnp.sum(p, axis=-1, keepdims=True), approx=True)
        outs.append(jnp.dot(p.astype(jnp.bfloat16), v,
                            preferred_element_type=jnp.float32))     # (T, dh)
    o_ref[0] = jnp.concatenate(outs, axis=-1).astype(o_ref.dtype)    # (T, E)


# ----------------------------- kernel wrappers -----------------------------


def linear(x2d, w, b, activation=None):
    M, K = x2d.shape
    N = w.shape[1]
    tm = _row_tile(M)
    return pl.pallas_call(
        functools.partial(_linear_kernel, activation=activation),
        out_shape=jax.ShapeDtypeStruct((M, N), x2d.dtype),
        grid=(M // tm,),
        in_specs=[
            pl.BlockSpec((tm, K), lambda i: (i, 0)),
            pl.BlockSpec((K, N), lambda i: (0, 0)),
            pl.BlockSpec((1, N), lambda i: (0, 0)),
        ],
        out_specs=pl.BlockSpec((tm, N), lambda i: (i, 0)),
        compiler_params=_PARALLEL_1D,
    )(x2d, w, b)


def linear_residual_layernorm(x2d, residual, w, b, gamma, beta, eps=1e-5):
    M, K = x2d.shape
    N = w.shape[1]
    tm = _row_tile(M)
    return pl.pallas_call(
        functools.partial(_linear_res_ln_kernel, eps=eps),
        out_shape=jax.ShapeDtypeStruct((M, N), x2d.dtype),
        grid=(M // tm,),
        in_specs=[
            pl.BlockSpec((tm, K), lambda i: (i, 0)),
            pl.BlockSpec((tm, N), lambda i: (i, 0)),
            pl.BlockSpec((K, N), lambda i: (0, 0)),
            pl.BlockSpec((1, N), lambda i: (0, 0)),
            pl.BlockSpec((1, N), lambda i: (0, 0)),
            pl.BlockSpec((1, N), lambda i: (0, 0)),
        ],
        out_specs=pl.BlockSpec((tm, N), lambda i: (i, 0)),
        compiler_params=_PARALLEL_1D,
    )(x2d, residual, w, b, gamma, beta)


def ffn_residual_layernorm(x2d, w1, b1, w2, b2, gamma, beta, eps=1e-5):
    M, E = x2d.shape
    F = w1.shape[1]
    tm = _row_tile(M)
    return pl.pallas_call(
        functools.partial(_ffn_res_ln_kernel, eps=eps),
        out_shape=jax.ShapeDtypeStruct((M, E), x2d.dtype),
        grid=(M // tm,),
        in_specs=[
            pl.BlockSpec((tm, E), lambda i: (i, 0)),
            pl.BlockSpec((E, F), lambda i: (0, 0)),
            pl.BlockSpec((1, F), lambda i: (0, 0)),
            pl.BlockSpec((F, E), lambda i: (0, 0)),
            pl.BlockSpec((1, E), lambda i: (0, 0)),
            pl.BlockSpec((1, E), lambda i: (0, 0)),
            pl.BlockSpec((1, E), lambda i: (0, 0)),
        ],
        out_specs=pl.BlockSpec((tm, E), lambda i: (i, 0)),
        compiler_params=_PARALLEL_1D,
    )(x2d, w1, b1, w2, b2, gamma, beta)


def linear_layernorm(x2d, w, b, gamma, beta, eps=1e-5):
    M, K = x2d.shape
    N = w.shape[1]
    tm = _row_tile(M)
    return pl.pallas_call(
        functools.partial(_linear_ln_kernel, eps=eps),
        out_shape=jax.ShapeDtypeStruct((M, N), x2d.dtype),
        grid=(M // tm,),
        in_specs=[
            pl.BlockSpec((tm, K), lambda i: (i, 0)),
            pl.BlockSpec((K, N), lambda i: (0, 0)),
            pl.BlockSpec((1, N), lambda i: (0, 0)),
            pl.BlockSpec((1, N), lambda i: (0, 0)),
            pl.BlockSpec((1, N), lambda i: (0, 0)),
        ],
        out_specs=pl.BlockSpec((tm, N), lambda i: (i, 0)),
        compiler_params=_PARALLEL_1D,
    )(x2d, w, b, gamma, beta)


def fused_attention(qkv_btE3, nhead):
    """qkv: (B, T, 3E) -> attention output (B, T, E), lane-dense stores."""
    B, T, threeE = qkv_btE3.shape
    emb = threeE // 3
    return pl.pallas_call(
        functools.partial(_attention_kernel, nhead=nhead, emb=emb),
        out_shape=jax.ShapeDtypeStruct((B, T, emb), qkv_btE3.dtype),
        grid=(B,),
        in_specs=[pl.BlockSpec((1, T, threeE), lambda b: (b, 0, 0))],
        out_specs=pl.BlockSpec((1, T, emb), lambda b: (b, 0, 0)),
        compiler_params=_PARALLEL_1D,
    )(qkv_btE3)


# ------------------------ model (glue + parameters) ------------------------


def _init_linear(key, fan_in, fan_out):
    """PyTorch nn.Linear-style uniform init. Returns W (K,N), b (1,N) in f32."""
    kw, kb = jax.random.split(key)
    lim = 1.0 / float(fan_in) ** 0.5
    w = jax.random.uniform(kw, (fan_in, fan_out), jnp.float32, -lim, lim)
    b = jax.random.uniform(kb, (1, fan_out), jnp.float32, -lim, lim)
    return w, b


def init_params(key, pose_input_dim, hidden_dim, nhead, num_layers, dim_ff, llm_dim):
    keys = jax.random.split(key, 2 + num_layers)
    params = {}
    pw, pb = _init_linear(keys[0], pose_input_dim, hidden_dim)
    params["proj_w"], params["proj_b"] = pw.astype(jnp.bfloat16), pb

    dh = hidden_dim // nhead
    scale = 1.0 / float(dh) ** 0.5
    layers = []
    for li in range(num_layers):
        lk = jax.random.split(keys[2 + li], 6)
        wq, bq = _init_linear(lk[0], hidden_dim, hidden_dim)
        wk, bk = _init_linear(lk[1], hidden_dim, hidden_dim)
        wv, bv = _init_linear(lk[2], hidden_dim, hidden_dim)
        wo, bo = _init_linear(lk[3], hidden_dim, hidden_dim)
        w1, b1 = _init_linear(lk[4], hidden_dim, dim_ff)
        w2, b2 = _init_linear(lk[5], dim_ff, hidden_dim)
        layer = {
            # fused QKV with 1/sqrt(dh) folded into the Q slice
            "wqkv": jnp.concatenate([wq * scale, wk, wv], axis=1).astype(jnp.bfloat16),
            "bqkv": jnp.concatenate([bq * scale, bk, bv], axis=1),
            "wo": wo.astype(jnp.bfloat16), "bo": bo,
            "w1": w1.astype(jnp.bfloat16), "b1": b1,
            "w2": w2.astype(jnp.bfloat16), "b2": b2,
            "ln1_g": jnp.ones((1, hidden_dim), jnp.float32),
            "ln1_b": jnp.zeros((1, hidden_dim), jnp.float32),
            "ln2_g": jnp.ones((1, hidden_dim), jnp.float32),
            "ln2_b": jnp.zeros((1, hidden_dim), jnp.float32),
        }
        layers.append(layer)
    params["layers"] = layers

    fw, fb = _init_linear(keys[1], hidden_dim, llm_dim)
    params["fc_w"], params["fc_b"] = fw.astype(jnp.bfloat16), fb
    params["norm_g"] = jnp.ones((1, llm_dim), jnp.float32)
    params["norm_b"] = jnp.zeros((1, llm_dim), jnp.float32)
    return params


def transformer_encoder_layer(x2d, p, B, T, nhead):
    """PyTorch TransformerEncoderLayer (batch_first, norm_first=False, eval)."""
    M, E = x2d.shape
    # fused QKV projection (scale folded into wq)
    qkv = linear(x2d, p["wqkv"], p["bqkv"])                       # (M, 3E)
    # per-batch attention, heads handled inside the kernel, lane-dense output
    attn = fused_attention(qkv.reshape(B, T, 3 * E), nhead)       # (B, T, E)
    attn = attn.reshape(M, E)
    # out-proj + residual + LayerNorm (post-norm), all fused
    x2d = linear_residual_layernorm(attn, x2d, p["wo"], p["bo"],
                                    p["ln1_g"], p["ln1_b"])
    # FFN (ReLU) + residual + LayerNorm, all fused
    x2d = ffn_residual_layernorm(x2d, p["w1"], p["b1"], p["w2"], p["b2"],
                                 p["ln2_g"], p["ln2_b"])
    return x2d


def youtube_asl_forward(params, lh, rh, body, face, nhead=8,
                        valid_pose_seq_mask=None):
    """Pose-modality forward of YouTubeASLBaseline up to the LLM boundary.

    Returns (feat_embeds, attention_mask): feat_embeds is what the PyTorch
    module feeds to the MBart encoder as inputs_embeds.
    """
    B, T = lh.shape[0], lh.shape[1]
    pose = jnp.concatenate([lh, rh, body, face], axis=2)          # (B, T, N, C)
    x = pose.reshape(B * T, -1)                                   # (B*T, pose_dim)

    # pose_projector
    x = linear(x, params["proj_w"], params["proj_b"])             # (B*T, hidden)
    # pose_temporal_encoder (2-layer TransformerEncoder)
    for layer in params["layers"]:
        x = transformer_encoder_layer(x, layer, B, T, nhead)
    # fc + final LayerNorm (fused)
    feat = linear_layernorm(x, params["fc_w"], params["fc_b"],
                            params["norm_g"], params["norm_b"])   # (B*T, llm_dim)
    feat = feat.reshape(B, T, -1)

    # TODO(synk): MBart encoder/decoder + generate()/tokenizer require the
    # pretrained facebook/mbart-large-50 checkpoint; not implemented here.
    return feat, valid_pose_seq_mask


# --------------------------------- main ---------------------------------


if __name__ == "__main__":
    # Small shapes consistent with the module:
    #   lh/rh: 21 keypoints, body: 9, face: 18 -> 69 keypoints * 2D = 138
    B, T = 2, 8
    POSE_INPUT_DIM = 138
    HIDDEN_DIM = 128          # (module default 512; scaled down)
    NHEAD = 8
    NUM_LAYERS = 2
    DIM_FF = 256              # (module default 512; scaled down)
    LLM_DIM = 256             # (mbart-large-50 d_model=1024; scaled down)

    root = jax.random.PRNGKey(0)
    k_lh, k_rh, k_body, k_face, k_par = jax.random.split(root, 5)
    lh = jax.random.normal(k_lh, (B, T, 21, 2), jnp.float32)
    rh = jax.random.normal(k_rh, (B, T, 21, 2), jnp.float32)
    body = jax.random.normal(k_body, (B, T, 9, 2), jnp.float32)
    face = jax.random.normal(k_face, (B, T, 18, 2), jnp.float32)
    valid_pose_seq_mask = jnp.ones((B, T), jnp.bool_)

    params = init_params(k_par, POSE_INPUT_DIM, HIDDEN_DIM, NHEAD,
                         NUM_LAYERS, DIM_FF, LLM_DIM)

    feat_embeds, mask = youtube_asl_forward(
        params, lh, rh, body, face, nhead=NHEAD,
        valid_pose_seq_mask=valid_pose_seq_mask)
    jax.block_until_ready(feat_embeds)

    assert feat_embeds.shape == (B, T, LLM_DIM), feat_embeds.shape
    assert bool(jnp.all(jnp.isfinite(feat_embeds)))
    print("KERNEL_OK")
</pallas_src>

<mosaic_0001>
module attributes {stable_mosaic.version = 11 : i64} {
  func.func @_linear_kernel(%arg0: i32, %arg1: memref<16x138xf32, #tpu.memory_space<vmem>>, %arg2: memref<138x128xbf16, #tpu.memory_space<vmem>>, %arg3: memref<1x128xf32, #tpu.memory_space<vmem>>, %arg4: memref<16x128xf32, #tpu.memory_space<vmem>>) attributes {dimension_semantics = [#tpu.dimension_semantics<parallel>], iteration_bounds = array<i64: 1>, scalar_prefetch = 0 : i64, scratch_operands = 0 : i64, tpu.core_type = #tpu.core_type<tc>, window_params = [{transform_indices = @transform_0, window_bounds = array<i64: 16, 138>}, {pipeline_mode = #tpu.pipeline_mode<synchronous>, transform_indices = @transform_1, window_bounds = array<i64: 138, 128>}, {pipeline_mode = #tpu.pipeline_mode<synchronous>, transform_indices = @transform_2, window_bounds = array<i64: 1, 128>}, {transform_indices = @transform_3, window_bounds = array<i64: 16, 128>}]} {
    %c0 = arith.constant 0 : index
    %c0_0 = arith.constant 0 : index
    %0 = vector.load %arg1[%c0, %c0_0] : memref<16x138xf32, #tpu.memory_space<vmem>>, vector<16x138xf32>
    %1 = arith.truncf %0 : vector<16x138xf32> to vector<16x138xbf16>
    %c0_1 = arith.constant 0 : index
    %c0_2 = arith.constant 0 : index
    %2 = vector.load %arg2[%c0_1, %c0_2] : memref<138x128xbf16, #tpu.memory_space<vmem>>, vector<138x128xbf16>
    %cst = arith.constant dense<0.000000e+00> : vector<16x128xf32>
    %3 = tpu.matmul %1, %2, %cst {dimension_numbers = #tpu.dot_dimension_numbers<[1], [0], [0], [1], [0, 0, 1, 1], [], []>} : vector<16x138xbf16>, vector<138x128xbf16>, vector<16x128xf32> -> vector<16x128xf32>
    %c0_3 = arith.constant 0 : index
    %c0_4 = arith.constant 0 : index
    %4 = vector.load %arg3[%c0_3, %c0_4] : memref<1x128xf32, #tpu.memory_space<vmem>>, vector<1x128xf32>
    %5 = vector.broadcast %4 : vector<1x128xf32> to vector<16x128xf32>
    %6 = arith.addf %3, %5 : vector<16x128xf32>
    %c0_5 = arith.constant 0 : index
    %c0_6 = arith.constant 0 : index
    %7 = vector.load %arg4[%c0_5, %c0_6] : memref<16x128xf32, #tpu.memory_space<vmem>>, vector<16x128xf32>
    tpu.vector_store %arg4[%c0_5, %c0_6], %6 {strides = array<i32>} : memref<16x128xf32, #tpu.memory_space<vmem>>, vector<16x128xf32>,
    return
  }
  func.func @transform_0(%arg0: i32) -> (i32, i32) {
    %c0_i32 = arith.constant 0 : i32
    %c0_i32_0 = arith.constant 0 : i32
    return %arg0, %c0_i32 : i32, i32
  }
  func.func @transform_1(%arg0: i32) -> (i32, i32) {
    %c0_i32 = arith.constant 0 : i32
    %c0_i32_0 = arith.constant 0 : i32
    %c0_i32_1 = arith.constant 0 : i32
    return %c0_i32, %c0_i32_0 : i32, i32
  }
  func.func @transform_2(%arg0: i32) -> (i32, i32) {
    %c0_i32 = arith.constant 0 : i32
    %c0_i32_0 = arith.constant 0 : i32
    %c0_i32_1 = arith.constant 0 : i32
    return %c0_i32, %c0_i32_0 : i32, i32
  }
  func.func @transform_3(%arg0: i32) -> (i32, i32) {
    %c0_i32 = arith.constant 0 : i32
    %c0_i32_0 = arith.constant 0 : i32
    return %arg0, %c0_i32 : i32, i32
  }
}

</mosaic_0001>

<llo_original>
// kernel: tpu_custom_call.1
$region0: #{tpu_custom_call.1}
  #allocation0 [shape = 'u32[]', space=smem, size = 0x4, offset = 0x4, fixed_abs, tag = 'smem constant byte address 0x4 - core index']
  #allocation1 [shape = 'u32[72,128]{1,0:T(1,128)}', space=vmem, size = 0x9000, scoped, tag = 'internal scratch']
  %s0 = inlined_call_operand.hbm [shape: f32[16,138], index: 0, kind: input, shape index: {}]
  %s1 = inlined_call_operand.hbm [shape: bf16[138,128], index: 1, kind: input, shape index: {}]
  %s2 = inlined_call_operand.vmem [shape: f32[1,128], index: 2, kind: input, shape index: {}]
  %s3 = inlined_call_operand.hbm [shape: f32[16,128], index: 3, kind: output, shape index: {}]
  %s4 = sld [smem:[#allocation0]]
  $region30: #{tpu_custom_call.1} parent=0
    _
  %s6 = ssub.s32 1, %s4
  %s7 = scalar_select 0, %s6, %s4
  $region1: #{tpu_custom_call.1} parent=0
    #allocation2 [shape = 'u8[16384]{0}', space=vmem, size = 0x4000, scoped, tag = 'input window, operand 0, single buffered']
    #allocation3 [shape = 's32[1]{0}', space=sflag, size = 0x4, scoped, tag = 'scoped memory for tpu_custom_call.1']
    #allocation4 [shape = 's32[1]{0}', space=sflag, size = 0x4, scoped, tag = 'scoped memory for tpu_custom_call.1']
    #allocation5 [shape = 'u8[36864]{0}', space=vmem, size = 0x9000, scoped, tag = 'input window, operand 1, single buffered']
    #allocation6 [shape = 's32[1]{0}', space=sflag, size = 0x4, scoped, tag = 'scoped memory for tpu_custom_call.1']
    #allocation7 [shape = 'u8[8192]{0}', space=vmem, size = 0x2000, scoped, tag = 'output window, operand 0, single buffered']
    %8 = vsyncpa [#allocation3], 0
    %9 = vsyncpa [#allocation6], 0
    %10 = vsyncpa [#allocation4], 0
    // Predicated region
    $region2: #{tpu_custom_call.1} parent=1 // pred_check
      _
    $region3: #{tpu_custom_call.1} parent=1 // pred_check_branch
      %12 = sbr.rel (0) target = $region5
    $region4: #{tpu_custom_call.1} parent=1 // pred_region
      %14 = vsyncadd [#allocation3], 0
      %s15 = sshll.u32 %s0, 4
      %s16 = int_to_ptr.hbm [resolvable:$true] %s15
      %s17 = sshll.u32 [#allocation2], 4
      %s18 = int_to_ptr.vmem [resolvable:$true] %s17
      %23 = dma.hbm_to_vmem [thread:$0]  %s16, 512, %s18, [#allocation3], 256, 256, 16
    $region5: #{tpu_custom_call.1} parent=1 // pred_fallthru
      _
    // Predicated region
    $region6: #{tpu_custom_call.1} parent=1 // pred_check
      _
    $region7: #{tpu_custom_call.1} parent=1 // pred_check_branch
      %25 = sbr.rel (0) target = $region9
    $region8: #{tpu_custom_call.1} parent=1 // pred_region
      %27 = vsyncadd [#allocation6], 0
      %s28 = sshll.u32 %s1, 4
      %s29 = int_to_ptr.hbm [resolvable:$true] %s28
      %s30 = sshll.u32 [#allocation5], 4
      %s31 = int_to_ptr.vmem [resolvable:$true] %s30
      %36 = dma.hbm_to_vmem [thread:$0]  %s29, 1152, %s31, [#allocation6], 64, 64, 4
    $region9: #{tpu_custom_call.1} parent=1 // pred_fallthru
      _
    // Predicated region
    $region10: #{tpu_custom_call.1} parent=1 // pred_check
      _
    $region11: #{tpu_custom_call.1} parent=1 // pred_check_branch
      %38 = sbr.rel (0) target = $region13
    $region12: #{tpu_custom_call.1} parent=1 // pred_region
      _
    $region13: #{tpu_custom_call.1} parent=1 // pred_fallthru
      _
    // Predicated region
    $region14: #{tpu_custom_call.1} parent=1 // pred_check
      _
    $region15: #{tpu_custom_call.1} parent=1 // pred_check_branch
      %40 = sbr.rel (0) target = $region17
    $region16: #{tpu_custom_call.1} parent=1 // pred_region
      %42 = dma.done [#allocation3], 512
    $region17: #{tpu_custom_call.1} parent=1 // pred_fallthru
      _
    // Predicated region
    $region18: #{tpu_custom_call.1} parent=1 // pred_check
      _
    $region19: #{tpu_custom_call.1} parent=1 // pred_check_branch
      %44 = sbr.rel (0) target = $region21
    $region20: #{tpu_custom_call.1} parent=1 // pred_region
      %46 = dma.done [#allocation6], 1152
    $region21: #{tpu_custom_call.1} parent=1 // pred_fallthru
      _
    %v48 = vld [vmem:[#allocation2] sm:$0xff]
    %v49 = vld [vmem:[#allocation2 + $0x8] sm:$0xff]
    %v50 = vld [vmem:[#allocation2 + $0x10] sm:$0xff]
    %v51 = vld [vmem:[#allocation2 + $0x18] sm:$0xff]
    %v52 = vpack.c.bf16 %v50, %v48
    %v53 = vpack.c.bf16 %v51, %v49
    %v54 = vld [vmem:[#allocation5] sm:$0xf]
    %v55 = vld [vmem:[#allocation5 + $0x4] sm:$0xf]
    %v56 = vld [vmem:[#allocation5 + $0x8] sm:$0xf]
    %v57 = vld [vmem:[#allocation5 + $0xc] sm:$0xf]
    %v58 = vld [vmem:[#allocation5 + $0x10] sm:$0xf]
    %v59 = vld [vmem:[#allocation5 + $0x14] sm:$0xf]
    %v60 = vld [vmem:[#allocation5 + $0x18] sm:$0xf]
    %v61 = vld [vmem:[#allocation5 + $0x1c] sm:$0xf]
    %v62 = vld [vmem:[#allocation5 + $0x20] sm:$0xf]
    %v63 = vld [vmem:[#allocation5 + $0x24] sm:$0xf]
    %v64 = vld [vmem:[#allocation5 + $0x28] sm:$0xf]
    %v65 = vld [vmem:[#allocation5 + $0x2c] sm:$0xf]
    %v66 = vld [vmem:[#allocation5 + $0x30] sm:$0xf]
    %v67 = vld [vmem:[#allocation5 + $0x34] sm:$0xf]
    %v68 = vld [vmem:[#allocation5 + $0x38] sm:$0xf]
    %v69 = vld [vmem:[#allocation5 + $0x3c] sm:$0xf]
    %v70 = vld [vmem:[#allocation5 + $0x40] sm:$0xf]
    %v71 = vld [vmem:[#allocation5 + $0x44] sm:$0x1]
    %v72 = vld [vmem:[%s2] sm:$0x1]
    %v74 = vperm.slane %v72, 0
    %v94 = vunpack.c.l.b16 %v54
    %v95 = vunpack.c.l.b16 %v55
    %v96 = vunpack.c.l.b16 %v56
    %v97 = vunpack.c.l.b16 %v57
    %v98 = vunpack.c.l.b16 %v58
    %v99 = vunpack.c.l.b16 %v59
    %v100 = vunpack.c.l.b16 %v60
    %v101 = vunpack.c.l.b16 %v61
    %v102 = vunpack.c.l.b16 %v62
    %v103 = vunpack.c.l.b16 %v63
    %v104 = vunpack.c.l.b16 %v64
    %v105 = vunpack.c.l.b16 %v65
    %v106 = vunpack.c.l.b16 %v66
    %v107 = vunpack.c.l.b16 %v67
    %v108 = vunpack.c.l.b16 %v68
    %v109 = vunpack.c.l.b16 %v69
    %v110 = vunpack.c.l.b16 %v70
    %v111 = vunpack.c.l.b16 %v71
    %v112 = vpack.c.b16 %v95, %v94
    %v113 = vpack.c.b16 %v97, %v96
    %v114 = vpack.c.b16 %v99, %v98
    %v115 = vpack.c.b16 %v101, %v100
    %v116 = vpack.c.b16 %v103, %v102
    %v117 = vpack.c.b16 %v105, %v104
    %v118 = vpack.c.b16 %v107, %v106
    %v119 = vpack.c.b16 %v109, %v108
    %v120 = vpack.c.b16 %v111, %v110
    %vm129 = vcmask 80896
    %v131 = vsel %vm129, %v53, 0
    %vm133 = vcmask 1044480
    %v135 = vsel %vm133, %v120, 0
    %137 = vmatpush.bf16.msra.mxu0 %v119
    %138 = vmatpush.bf16.msra.mxu0 %v118
    %139 = vmatpush.bf16.msra.mxu0 %v117
    %140 = vmatpush.bf16.msra.mxu0 %v116
    %141 = vmatpush.bf16.msra.mxu0 %v115
    %142 = vmatpush.bf16.msra.mxu0 %v114
    %143 = vmatpush.bf16.msra.mxu0 %v113
    %144 = vmatpush.bf16.msra.mxu0 %v112
    %145 = vmatmul.bf16.gmra.mxu0 %v52
    %v146 = vpop.f32.mrf.mxu0
    %v147 = vadd.f32 %v74, %v146
    %v148 = vpop.f32.mrf.mxu0
    %v149 = vadd.f32 %v74, %v148
    %150 = vdwg.mxu0
    %151 = vmatpush.bf16.msra.mxu0 0
    %152 = vmatpush.bf16.msra.mxu0 0
    %153 = vmatpush.bf16.msra.mxu0 0
    %154 = vmatpush.bf16.msra.mxu0 0
    %155 = vmatpush.bf16.msra.mxu0 0
    %156 = vmatpush.bf16.msra.mxu0 0
    %157 = vmatpush.bf16.msra.mxu0 0
    %158 = vmatpush.bf16.msra.mxu0 %v135
    %159 = vmatmul.bf16.gmra.mxu0 %v131
    %v160 = vpop.f32.mrf.mxu0
    %v161 = vadd.f32 %v147, %v160
    %v162 = vpop.f32.mrf.mxu0
    %v163 = vadd.f32 %v149, %v162
    %164 = vdwg.mxu0
    %165 = vst [vmem:[#allocation7] sm:$0xff] %v161
    %166 = vst [vmem:[#allocation7 + $0x8] sm:$0xff] %v163
    // Predicated region
    $region22: #{tpu_custom_call.1} parent=1 // pred_check
      _
    $region23: #{tpu_custom_call.1} parent=1 // pred_check_branch
      %168 = sbr.rel (0) target = $region25
    $region24: #{tpu_custom_call.1} parent=1 // pred_region
      %170 = vsyncadd [#allocation4], 0
      %s171 = sshll.u32 [#allocation7], 4
      %s172 = int_to_ptr.vmem [resolvable:$true] %s171
      %s173 = sshll.u32 %s3, 4
      %s174 = int_to_ptr.hbm [resolvable:$true] %s173
      %179 = dma.vmem_to_hbm [thread:$0]  %s172, 256, %s174, [#allocation4], 128, 128, 8
    $region25: #{tpu_custom_call.1} parent=1 // pred_fallthru
      _
    // Predicated region
    $region26: #{tpu_custom_call.1} parent=1 // pred_check
      _
    $region27: #{tpu_custom_call.1} parent=1 // pred_check_branch
      %181 = sbr.rel (0) target = $region29
    $region28: #{tpu_custom_call.1} parent=1 // pred_region
      %183 = dma.done [#allocation4], 256
    $region29: #{tpu_custom_call.1} parent=1 // pred_fallthru
      _
    %184 = vsyncpa [#allocation3], 1
    %185 = vsyncpa [#allocation6], 1
    %186 = vsyncpa [#allocation4], 1

</llo_original>
